<compile_context>
chip_gen: v7x
topology: tpu7x:2x2x1
jax: 0.10.0
libtpu: 0.0.40
codegen_flags: <defaults>
</compile_context>

<pallas_src>
import functools

import jax
import jax.numpy as jnp
from jax import lax
from jax.experimental import pallas as pl
from jax.experimental.pallas import tpu as pltpu


_VMEM_BUDGET_BYTES = 40 * (1 << 20)   # conservative: fits v7x's 64 MiB physical VMEM
_STREAM_DTYPE = jnp.bfloat16          # streamed x / fused-output dtype
_STREAM_ITEMSIZE = 2                  # bytes per bf16 element


def _cdiv(a, b):
    return (a + b - 1) // b


def _round_up(x, m):
    return _cdiv(x, m) * m


def _st_net_exp_kernel(x_ref, w1_ref, b1_ref, w2_ref, b2_ref, scale_ref, y_ref,
                       *, out_dim, lane_aligned):
    # linear1 (+bias) + tanh: bf16 MXU matmul, f32 accumulation, f32 tanh.
    h = jnp.tanh(
        jnp.dot(x_ref[...], w1_ref[...], preferred_element_type=jnp.float32)
        + b1_ref[...]
    )
    # single fused linear2 over both halves: (tb, hid) @ (hid, 2*out), f32 acc.
    y = (
        jnp.dot(h.astype(w2_ref.dtype), w2_ref[...],
                preferred_element_type=jnp.float32)
        + b2_ref[...]
    )
    rescale = scale_ref[0, 0]            # exp(rescale_w), precomputed host-side
    if lane_aligned:
        # out_dim multiple of 128: two lane-aligned sub-stores; tanh evaluated
        # only on the s-half (halves EUP work vs. full-width tanh + select).
        y_ref[:, :out_dim] = (rescale * jnp.tanh(y[:, :out_dim])).astype(y_ref.dtype)
        y_ref[:, out_dim:] = y[:, out_dim:].astype(y_ref.dtype)
    else:
        # non-lane-aligned split: keep a single full-width lane-dense masked store.
        col = lax.broadcasted_iota(jnp.int32, y.shape, dimension=1)
        y_ref[...] = jnp.where(col < out_dim,
                               rescale * jnp.tanh(y), y).astype(y_ref.dtype)


def prepare_params(w1, b1, w2, b2, rescale_w, param_dtype=jnp.bfloat16):
    """One-time re-layout of PyTorch-layout parameters into kernel layout.

    w1: (hid, in)  -> (in, hid);  w2: (2*out, hid) -> (hid, 2*out).
    Biases stay f32 (added after f32 accumulation).  exp(rescale_w) is computed
    here (with the PyTorch Rescale NaN guard) so the kernel never re-exponentiates.
    Call once per parameter set (NOT in the hot forward path).
    """
    hid = w1.shape[0]
    two_out = w2.shape[0]
    scale = jnp.exp(jnp.asarray(rescale_w, jnp.float32)).reshape(1, 1)
    if bool(jnp.isnan(scale).any()):      # Rescale's runtime guard, host-side
        raise RuntimeError("Rescale factor has NaN entries")
    return dict(
        w1=jnp.asarray(w1).T.astype(param_dtype),                  # (in, hid)
        b1=jnp.asarray(b1).reshape(1, hid).astype(jnp.float32),    # (1, hid)
        w2=jnp.asarray(w2).T.astype(param_dtype),                  # (hid, 2*out)
        b2=jnp.asarray(b2).reshape(1, two_out).astype(jnp.float32),
        scale=scale.astype(jnp.float32),                           # exp(rescale_w)
    )


def _pick_batch_tile(batch, block_batch, sublane, stream_row_bytes, param_bytes):
    # Minimize padding waste: spread the batch over cdiv(batch, block_batch) tiles.
    n_tiles = max(1, _cdiv(batch, block_batch))
    tb = _round_up(_cdiv(batch, n_tiles), sublane)
    # Cap tb so resident params + double-buffered streamed tiles + f32 temps fit
    # within the VMEM budget (re-derived per call, chip-agnostic conservative cap).
    while tb > sublane and param_bytes + tb * stream_row_bytes > _VMEM_BUDGET_BYTES:
        tb = _round_up(_cdiv(tb, 2), sublane)
    # v7x has 2 TensorCores: prefer >= 2 grid steps so both get work.
    while _cdiv(batch, tb) < 2 and tb > sublane:
        tb = _round_up(_cdiv(tb, 2), sublane)
    return tb


@functools.partial(jax.jit, static_argnames=("block_batch", "single_buffer_params"))
def _st_net_exp_forward_impl(x, params, block_batch, single_buffer_params):
    batch, input_dim = x.shape
    hid = params["w1"].shape[1]
    two_out = params["w2"].shape[1]
    out_dim = two_out // 2
    lane_aligned = (out_dim % 128 == 0)

    # Stream x / output in bf16 (HBM-bound); cast once here, not per grid step.
    x = x.astype(_STREAM_DTYPE)
    sublane = 16  # bf16 native sublane tile

    param_bytes = sum(int(v.size) * v.dtype.itemsize for v in params.values())
    # per-batch-row VMEM: 2x (double-buffered) streamed bf16 x + y rows, plus f32
    # intermediates (h and y accumulators).
    stream_row_bytes = (2 * (input_dim + two_out) * _STREAM_ITEMSIZE
                        + (hid + 2 * two_out) * 4)

    tb = _pick_batch_tile(batch, block_batch, sublane, stream_row_bytes, param_bytes)
    b_pad = _round_up(batch, tb)
    if b_pad != batch:
        x = jnp.pad(x, ((0, b_pad - batch), (0, 0)))
    grid = (b_pad // tb,)

    # Scoped VMEM sized to actual usage with headroom, capped below v7x physical.
    vmem_limit = int(min(_VMEM_BUDGET_BYTES + (8 << 20),
                         max(16 << 20,
                             2 * (param_bytes + tb * stream_row_bytes) + (2 << 20))))

    kernel = functools.partial(_st_net_exp_kernel,
                               out_dim=out_dim, lane_aligned=lane_aligned)

    # Resident parameters: constant index_map; single-buffer them when supported.
    param_mode = (pl.Buffered(1)
                  if (single_buffer_params and hasattr(pl, "Buffered")) else None)

    def const_spec(shape):
        return pl.BlockSpec(shape, lambda i: (0,) * len(shape),
                            pipeline_mode=param_mode)

    flops = 2 * b_pad * (input_dim * hid + hid * two_out)
    trans_cols = out_dim if lane_aligned else two_out
    transcendentals = b_pad * (hid + trans_cols)
    bytes_accessed = (b_pad * (input_dim + two_out) * _STREAM_ITEMSIZE + param_bytes)

    y = pl.pallas_call(
        kernel,
        out_shape=jax.ShapeDtypeStruct((b_pad, two_out), _STREAM_DTYPE),
        grid=grid,
        in_specs=[
            pl.BlockSpec((tb, input_dim), lambda i: (i, 0)),   # x: batch-tiled
            const_spec((input_dim, hid)),                      # w1: resident
            const_spec((1, hid)),                              # b1: resident
            const_spec((hid, two_out)),                        # w2: resident
            const_spec((1, two_out)),                          # b2: resident
            const_spec((1, 1)),                                # exp(rescale_w)
        ],
        out_specs=pl.BlockSpec((tb, two_out), lambda i: (i, 0)),
        compiler_params=pltpu.CompilerParams(
            dimension_semantics=("parallel",),
            vmem_limit_bytes=vmem_limit),
        cost_estimate=pl.CostEstimate(
            flops=flops,
            transcendentals=transcendentals,
            bytes_accessed=bytes_accessed),
    )(x, params["w1"], params["b1"], params["w2"], params["b2"], params["scale"])

    s = y[:batch, :out_dim]   # free XLA slices of the fused lane-dense output
    t = y[:batch, out_dim:]
    return s, t


def st_net_exp_forward(x, params, block_batch=512):
    """x: (B, input_dim); params: prepare_params() output. Returns (s, t) (bf16)."""
    try:
        return _st_net_exp_forward_impl(x, params, block_batch, True)
    except Exception:
        # This jax/mosaic build rejected pl.Buffered(1) on top-level BlockSpecs;
        # fall back to default double-buffered resident params.
        return _st_net_exp_forward_impl(x, params, block_batch, False)


def init_params(key, input_dim, hid_dim, output_dim):
    """Deterministic init matching ST_Net_Exp.reset_parameters() (PyTorch layout)."""
    bound = (6.0 / (input_dim + hid_dim)) ** 0.5          # xavier_uniform
    w1 = jax.random.uniform(key, (hid_dim, input_dim),
                            minval=-bound, maxval=bound, dtype=jnp.float32)
    b1 = jnp.zeros((hid_dim,), jnp.float32)
    w2 = jnp.full((2 * output_dim, hid_dim), 1e-10, dtype=jnp.float32)
    b2 = jnp.zeros((2 * output_dim,), jnp.float32)
    rescale_w = jnp.zeros((1,), jnp.float32)              # Rescale.weight
    return w1, b1, w2, b2, rescale_w


def reference_forward(x, w1, b1, w2, b2, rescale_w):
    """Pure-JAX f32 reference mirroring the PyTorch forward."""
    h = jnp.tanh(x @ w1.T + b1)
    y = h @ w2.T + b2
    output_dim = w2.shape[0] // 2
    s = y[:, :output_dim]
    t = y[:, output_dim:]
    s = jnp.exp(rescale_w[0]) * jnp.tanh(s)
    return s, t


if __name__ == "__main__":
    key = jax.random.PRNGKey(0)
    k_x, k_w, k_w2, k_b2, k_x2 = jax.random.split(key, 5)

    batch, input_dim, hid_dim, output_dim = 8, 16, 32, 16

    # --- check 1: module-faithful initialization (w2 = 1e-10, zero biases) ---
    x = jax.random.normal(k_x, (batch, input_dim), dtype=jnp.float32)
    w1, b1, w2, b2, rescale_w = init_params(k_w, input_dim, hid_dim, output_dim)
    params = prepare_params(w1, b1, w2, b2, rescale_w)    # hoisted, once per param set
    s, t = st_net_exp_forward(x, params)
    jax.block_until_ready((s, t))
    s_ref, t_ref = reference_forward(x, w1, b1, w2, b2, rescale_w)
    assert s.shape == (batch, output_dim) and t.shape == (batch, output_dim)
    assert jnp.allclose(s.astype(jnp.float32), s_ref, atol=1e-5, rtol=1e-2)
    assert jnp.allclose(t.astype(jnp.float32), t_ref, atol=1e-5, rtol=1e-2)

    # --- check 2: random weights + batch needing padding and a multi-step grid ---
    batch2 = 40
    x2 = jax.random.normal(k_x2, (batch2, input_dim), dtype=jnp.float32)
    w2_rand = jax.random.uniform(k_w2, (2 * output_dim, hid_dim),
                                 minval=-0.3, maxval=0.3, dtype=jnp.float32)
    b2_rand = jax.random.uniform(k_b2, (2 * output_dim,),
                                 minval=-0.1, maxval=0.1, dtype=jnp.float32)
    rescale2 = jnp.array([0.37], jnp.float32)
    params2 = prepare_params(w1, b1, w2_rand, b2_rand, rescale2)
    s2, t2 = st_net_exp_forward(x2, params2, block_batch=16)   # grid=(3,), 40 -> 48 pad
    jax.block_until_ready((s2, t2))
    s2_ref, t2_ref = reference_forward(x2, w1, b1, w2_rand, b2_rand, rescale2)
    assert s2.shape == (batch2, output_dim) and t2.shape == (batch2, output_dim)
    # looser tolerance: x / weights / output are streamed in bf16 (f32 accumulation)
    assert jnp.allclose(s2.astype(jnp.float32), s2_ref, atol=5e-2, rtol=5e-2)
    assert jnp.allclose(t2.astype(jnp.float32), t2_ref, atol=5e-2, rtol=5e-2)

    print("KERNEL_OK")
</pallas_src>

<mosaic_0001>
module attributes {stable_mosaic.version = 11 : i64} {
  func.func @_st_net_exp_kernel(%arg0: i32, %arg1: memref<16x16xbf16, #tpu.memory_space<vmem>>, %arg2: memref<16x32xbf16, #tpu.memory_space<vmem>>, %arg3: memref<1x32xf32, #tpu.memory_space<vmem>>, %arg4: memref<32x32xbf16, #tpu.memory_space<vmem>>, %arg5: memref<1x32xf32, #tpu.memory_space<vmem>>, %arg6: memref<1x1xf32, #tpu.memory_space<vmem>>, %arg7: memref<16x32xbf16, #tpu.memory_space<vmem>>) attributes {dimension_semantics = [#tpu.dimension_semantics<parallel>], iteration_bounds = array<i64: 1>, scalar_prefetch = 0 : i64, scratch_operands = 0 : i64, tpu.core_type = #tpu.core_type<tc>, window_params = [{transform_indices = @transform_0, window_bounds = array<i64: 16, 16>}, {pipeline_mode = #tpu.pipeline_mode<synchronous>, transform_indices = @transform_1, window_bounds = array<i64: 16, 32>}, {pipeline_mode = #tpu.pipeline_mode<synchronous>, transform_indices = @transform_2, window_bounds = array<i64: 1, 32>}, {pipeline_mode = #tpu.pipeline_mode<synchronous>, transform_indices = @transform_3, window_bounds = array<i64: 32, 32>}, {pipeline_mode = #tpu.pipeline_mode<synchronous>, transform_indices = @transform_4, window_bounds = array<i64: 1, 32>}, {pipeline_mode = #tpu.pipeline_mode<synchronous>, transform_indices = @transform_5, window_bounds = array<i64: 1, 1>}, {transform_indices = @transform_6, window_bounds = array<i64: 16, 32>}]} {
    %c0 = arith.constant 0 : index
    %c0_0 = arith.constant 0 : index
    %0 = vector.load %arg1[%c0, %c0_0] : memref<16x16xbf16, #tpu.memory_space<vmem>>, vector<16x16xbf16>
    %c0_1 = arith.constant 0 : index
    %c0_2 = arith.constant 0 : index
    %1 = vector.load %arg2[%c0_1, %c0_2] : memref<16x32xbf16, #tpu.memory_space<vmem>>, vector<16x32xbf16>
    %cst = arith.constant dense<0.000000e+00> : vector<16x32xf32>
    %2 = tpu.matmul %0, %1, %cst {dimension_numbers = #tpu.dot_dimension_numbers<[1], [0], [0], [1], [0, 0, 1, 1], [], []>} : vector<16x16xbf16>, vector<16x32xbf16>, vector<16x32xf32> -> vector<16x32xf32>
    %c0_3 = arith.constant 0 : index
    %c0_4 = arith.constant 0 : index
    %3 = vector.load %arg3[%c0_3, %c0_4] : memref<1x32xf32, #tpu.memory_space<vmem>>, vector<1x32xf32>
    %4 = vector.broadcast %3 : vector<1x32xf32> to vector<16x32xf32>
    %5 = arith.addf %2, %4 : vector<16x32xf32>
    %6 = math.tanh %5 : vector<16x32xf32>
    %7 = arith.truncf %6 : vector<16x32xf32> to vector<16x32xbf16>
    %c0_5 = arith.constant 0 : index
    %c0_6 = arith.constant 0 : index
    %8 = vector.load %arg4[%c0_5, %c0_6] : memref<32x32xbf16, #tpu.memory_space<vmem>>, vector<32x32xbf16>
    %cst_7 = arith.constant dense<0.000000e+00> : vector<16x32xf32>
    %9 = tpu.matmul %7, %8, %cst_7 {dimension_numbers = #tpu.dot_dimension_numbers<[1], [0], [0], [1], [0, 0, 1, 1], [], []>} : vector<16x32xbf16>, vector<32x32xbf16>, vector<16x32xf32> -> vector<16x32xf32>
    %c0_8 = arith.constant 0 : index
    %c0_9 = arith.constant 0 : index
    %10 = vector.load %arg5[%c0_8, %c0_9] : memref<1x32xf32, #tpu.memory_space<vmem>>, vector<1x32xf32>
    %11 = vector.broadcast %10 : vector<1x32xf32> to vector<16x32xf32>
    %12 = arith.addf %9, %11 : vector<16x32xf32>
    %c0_10 = arith.constant 0 : index
    %c0_11 = arith.constant 0 : index
    %13 = vector.load %arg6[%c0_10, %c0_11] : memref<1x1xf32, #tpu.memory_space<vmem>>, vector<1x1xf32>
    %14 = vector.extract %13[0, 0] : f32 from vector<1x1xf32>
    %15 = tpu.iota {dimensions = array<i32: 1>} : vector<16x32xi32>
    %c16_i32 = arith.constant 16 : i32
    %16 = vector.broadcast %c16_i32 : i32 to vector<16x32xi32>
    %17 = arith.cmpi slt, %15, %16 : vector<16x32xi32>
    %18 = math.tanh %12 : vector<16x32xf32>
    %19 = vector.broadcast %14 : f32 to vector<16x32xf32>
    %20 = arith.mulf %19, %18 : vector<16x32xf32>
    %21 = arith.select %17, %20, %12 : vector<16x32xi1>, vector<16x32xf32>
    %22 = arith.truncf %21 : vector<16x32xf32> to vector<16x32xbf16>
    %c0_12 = arith.constant 0 : index
    %c0_13 = arith.constant 0 : index
    %23 = vector.load %arg7[%c0_12, %c0_13] : memref<16x32xbf16, #tpu.memory_space<vmem>>, vector<16x32xbf16>
    tpu.vector_store %arg7[%c0_12, %c0_13], %22 {strides = array<i32>} : memref<16x32xbf16, #tpu.memory_space<vmem>>, vector<16x32xbf16>,
    return
  }
  func.func @transform_0(%arg0: i32) -> (i32, i32) {
    %c0_i32 = arith.constant 0 : i32
    %c0_i32_0 = arith.constant 0 : i32
    return %arg0, %c0_i32 : i32, i32
  }
  func.func @transform_1(%arg0: i32) -> (i32, i32) {
    %c0_i32 = arith.constant 0 : i32
    %c0_i32_0 = arith.constant 0 : i32
    %c0_i32_1 = arith.constant 0 : i32
    return %c0_i32, %c0_i32_0 : i32, i32
  }
  func.func @transform_2(%arg0: i32) -> (i32, i32) {
    %c0_i32 = arith.constant 0 : i32
    %c0_i32_0 = arith.constant 0 : i32
    %c0_i32_1 = arith.constant 0 : i32
    return %c0_i32, %c0_i32_0 : i32, i32
  }
  func.func @transform_3(%arg0: i32) -> (i32, i32) {
    %c0_i32 = arith.constant 0 : i32
    %c0_i32_0 = arith.constant 0 : i32
    %c0_i32_1 = arith.constant 0 : i32
    return %c0_i32, %c0_i32_0 : i32, i32
  }
  func.func @transform_4(%arg0: i32) -> (i32, i32) {
    %c0_i32 = arith.constant 0 : i32
    %c0_i32_0 = arith.constant 0 : i32
    %c0_i32_1 = arith.constant 0 : i32
    return %c0_i32, %c0_i32_0 : i32, i32
  }
  func.func @transform_5(%arg0: i32) -> (i32, i32) {
    %c0_i32 = arith.constant 0 : i32
    %c0_i32_0 = arith.constant 0 : i32
    %c0_i32_1 = arith.constant 0 : i32
    return %c0_i32, %c0_i32_0 : i32, i32
  }
  func.func @transform_6(%arg0: i32) -> (i32, i32) {
    %c0_i32 = arith.constant 0 : i32
    %c0_i32_0 = arith.constant 0 : i32
    return %arg0, %c0_i32 : i32, i32
  }
}

module attributes {stable_mosaic.version = 11 : i64} {
  func.func @_st_net_exp_kernel(%arg0: i32, %arg1: memref<16x16xbf16, #tpu.memory_space<vmem>>, %arg2: memref<16x32xbf16, #tpu.memory_space<vmem>>, %arg3: memref<1x32xf32, #tpu.memory_space<vmem>>, %arg4: memref<32x32xbf16, #tpu.memory_space<vmem>>, %arg5: memref<1x32xf32, #tpu.memory_space<vmem>>, %arg6: memref<1x1xf32, #tpu.memory_space<vmem>>, %arg7: memref<16x32xbf16, #tpu.memory_space<vmem>>) attributes {dimension_semantics = [#tpu.dimension_semantics<parallel>], iteration_bounds = array<i64: 1>, scalar_prefetch = 0 : i64, scratch_operands = 0 : i64, tpu.core_type = #tpu.core_type<tc>, window_params = [{transform_indices = @transform_0, window_bounds = array<i64: 16, 16>}, {pipeline_mode = #tpu.pipeline_mode<synchronous>, transform_indices = @transform_1, window_bounds = array<i64: 16, 32>}, {pipeline_mode = #tpu.pipeline_mode<synchronous>, transform_indices = @transform_2, window_bounds = array<i64: 1, 32>}, {pipeline_mode = #tpu.pipeline_mode<synchronous>, transform_indices = @transform_3, window_bounds = array<i64: 32, 32>}, {pipeline_mode = #tpu.pipeline_mode<synchronous>, transform_indices = @transform_4, window_bounds = array<i64: 1, 32>}, {pipeline_mode = #tpu.pipeline_mode<synchronous>, transform_indices = @transform_5, window_bounds = array<i64: 1, 1>}, {transform_indices = @transform_6, window_bounds = array<i64: 16, 32>}]} {
    %c0 = arith.constant 0 : index
    %c0_0 = arith.constant 0 : index
    %0 = vector.load %arg1[%c0, %c0_0] : memref<16x16xbf16, #tpu.memory_space<vmem>>, vector<16x16xbf16>
    %c0_1 = arith.constant 0 : index
    %c0_2 = arith.constant 0 : index
    %1 = vector.load %arg2[%c0_1, %c0_2] : memref<16x32xbf16, #tpu.memory_space<vmem>>, vector<16x32xbf16>
    %cst = arith.constant dense<0.000000e+00> : vector<16x32xf32>
    %2 = tpu.matmul %0, %1, %cst {dimension_numbers = #tpu.dot_dimension_numbers<[1], [0], [0], [1], [0, 0, 1, 1], [], []>} : vector<16x16xbf16>, vector<16x32xbf16>, vector<16x32xf32> -> vector<16x32xf32>
    %c0_3 = arith.constant 0 : index
    %c0_4 = arith.constant 0 : index
    %3 = vector.load %arg3[%c0_3, %c0_4] : memref<1x32xf32, #tpu.memory_space<vmem>>, vector<1x32xf32>
    %4 = vector.broadcast %3 : vector<1x32xf32> to vector<16x32xf32>
    %5 = arith.addf %2, %4 : vector<16x32xf32>
    %6 = math.tanh %5 : vector<16x32xf32>
    %7 = arith.truncf %6 : vector<16x32xf32> to vector<16x32xbf16>
    %c0_5 = arith.constant 0 : index
    %c0_6 = arith.constant 0 : index
    %8 = vector.load %arg4[%c0_5, %c0_6] : memref<32x32xbf16, #tpu.memory_space<vmem>>, vector<32x32xbf16>
    %cst_7 = arith.constant dense<0.000000e+00> : vector<16x32xf32>
    %9 = tpu.matmul %7, %8, %cst_7 {dimension_numbers = #tpu.dot_dimension_numbers<[1], [0], [0], [1], [0, 0, 1, 1], [], []>} : vector<16x32xbf16>, vector<32x32xbf16>, vector<16x32xf32> -> vector<16x32xf32>
    %c0_8 = arith.constant 0 : index
    %c0_9 = arith.constant 0 : index
    %10 = vector.load %arg5[%c0_8, %c0_9] : memref<1x32xf32, #tpu.memory_space<vmem>>, vector<1x32xf32>
    %11 = vector.broadcast %10 : vector<1x32xf32> to vector<16x32xf32>
    %12 = arith.addf %9, %11 : vector<16x32xf32>
    %c0_10 = arith.constant 0 : index
    %c0_11 = arith.constant 0 : index
    %13 = vector.load %arg6[%c0_10, %c0_11] : memref<1x1xf32, #tpu.memory_space<vmem>>, vector<1x1xf32>
    %14 = vector.extract %13[0, 0] : f32 from vector<1x1xf32>
    %15 = tpu.iota {dimensions = array<i32: 1>} : vector<16x32xi32>
    %c16_i32 = arith.constant 16 : i32
    %16 = vector.broadcast %c16_i32 : i32 to vector<16x32xi32>
    %17 = arith.cmpi slt, %15, %16 : vector<16x32xi32>
    %18 = math.tanh %12 : vector<16x32xf32>
    %19 = vector.broadcast %14 : f32 to vector<16x32xf32>
    %20 = arith.mulf %19, %18 : vector<16x32xf32>
    %21 = arith.select %17, %20, %12 : vector<16x32xi1>, vector<16x32xf32>
    %22 = arith.truncf %21 : vector<16x32xf32> to vector<16x32xbf16>
    %c0_12 = arith.constant 0 : index
    %c0_13 = arith.constant 0 : index
    %23 = vector.load %arg7[%c0_12, %c0_13] : memref<16x32xbf16, #tpu.memory_space<vmem>>, vector<16x32xbf16>
    tpu.vector_store %arg7[%c0_12, %c0_13], %22 {strides = array<i32>} : memref<16x32xbf16, #tpu.memory_space<vmem>>, vector<16x32xbf16>,
    return
  }
  func.func @transform_0(%arg0: i32) -> (i32, i32) {
    %c0_i32 = arith.constant 0 : i32
    %c0_i32_0 = arith.constant 0 : i32
    return %arg0, %c0_i32 : i32, i32
  }
  func.func @transform_1(%arg0: i32) -> (i32, i32) {
    %c0_i32 = arith.constant 0 : i32
    %c0_i32_0 = arith.constant 0 : i32
    %c0_i32_1 = arith.constant 0 : i32
    return %c0_i32, %c0_i32_0 : i32, i32
  }
  func.func @transform_2(%arg0: i32) -> (i32, i32) {
    %c0_i32 = arith.constant 0 : i32
    %c0_i32_0 = arith.constant 0 : i32
    %c0_i32_1 = arith.constant 0 : i32
    return %c0_i32, %c0_i32_0 : i32, i32
  }
  func.func @transform_3(%arg0: i32) -> (i32, i32) {
    %c0_i32 = arith.constant 0 : i32
    %c0_i32_0 = arith.constant 0 : i32
    %c0_i32_1 = arith.constant 0 : i32
    return %c0_i32, %c0_i32_0 : i32, i32
  }
  func.func @transform_4(%arg0: i32) -> (i32, i32) {
    %c0_i32 = arith.constant 0 : i32
    %c0_i32_0 = arith.constant 0 : i32
    %c0_i32_1 = arith.constant 0 : i32
    return %c0_i32, %c0_i32_0 : i32, i32
  }
  func.func @transform_5(%arg0: i32) -> (i32, i32) {
    %c0_i32 = arith.constant 0 : i32
    %c0_i32_0 = arith.constant 0 : i32
    %c0_i32_1 = arith.constant 0 : i32
    return %c0_i32, %c0_i32_0 : i32, i32
  }
  func.func @transform_6(%arg0: i32) -> (i32, i32) {
    %c0_i32 = arith.constant 0 : i32
    %c0_i32_0 = arith.constant 0 : i32
    return %arg0, %c0_i32 : i32, i32
  }
}

</mosaic_0001>

<llo_original>
// kernel: _st_net_exp_forward_impl.1
$region0: #{_st_net_exp_forward_impl.1}
  #allocation0 [shape = 'u32[]', space=smem, size = 0x4, offset = 0x4, fixed_abs, tag = 'smem constant byte address 0x4 - core index']
  #allocation1 [shape = 'u32[144,128]{1,0:T(1,128)}', space=vmem, size = 0x12000, scoped, tag = 'internal scratch']
  #allocation2 [shape = 'f32[1,1]{1,0:T(1,128)S(1)}', space=vmem, size = 0x200, scoped, tag = 'scoped memory for _st_net_exp_forward_impl.1']
  %s0 = inlined_call_operand.vmem [shape: bf16[16,16], index: 0, kind: input, shape index: {}]
  %s1 = inlined_call_operand.vmem [shape: bf16[16,32], index: 1, kind: input, shape index: {}]
  %s2 = inlined_call_operand.vmem [shape: f32[1,32], index: 2, kind: input, shape index: {}]
  %s3 = inlined_call_operand.vmem [shape: bf16[32,32], index: 3, kind: input, shape index: {}]
  %s4 = inlined_call_operand.vmem [shape: f32[1,32], index: 4, kind: input, shape index: {}]
  %s5 = inlined_call_operand.<no memory space> [shape: f32[1,1], index: 5, kind: input, shape index: {}]
  %s6 = inlined_call_operand.vmem [shape: bf16[16,32], index: 6, kind: output, shape index: {}]
  %s7 = sld [smem:[#allocation0]]
  $region34: #{_st_net_exp_forward_impl.1} parent=0
    _
  %s9 = ssub.s32 1, %s7
  %s10 = scalar_select 0, %s9, %s7
  %v11 = vstv %s5
  %12 = vst [vmem:[#allocation2] sm:$0x1] %v11
  // Predicated region
  $region2: #{_st_net_exp_forward_impl.1} parent=0 // pred_check
    _
  $region3: #{_st_net_exp_forward_impl.1} parent=0 // pred_check_branch
    %14 = sbr.rel (0) target = $region5
  $region4: #{_st_net_exp_forward_impl.1} parent=0 // pred_region
    _
  $region5: #{_st_net_exp_forward_impl.1} parent=0 // pred_fallthru
    _
  // Predicated region
  $region6: #{_st_net_exp_forward_impl.1} parent=0 // pred_check
    _
  $region7: #{_st_net_exp_forward_impl.1} parent=0 // pred_check_branch
    %16 = sbr.rel (0) target = $region9
  $region8: #{_st_net_exp_forward_impl.1} parent=0 // pred_region
    _
  $region9: #{_st_net_exp_forward_impl.1} parent=0 // pred_fallthru
    _
  // Predicated region
  $region10: #{_st_net_exp_forward_impl.1} parent=0 // pred_check
    _
  $region11: #{_st_net_exp_forward_impl.1} parent=0 // pred_check_branch
    %18 = sbr.rel (0) target = $region13
  $region12: #{_st_net_exp_forward_impl.1} parent=0 // pred_region
    _
  $region13: #{_st_net_exp_forward_impl.1} parent=0 // pred_fallthru
    _
  // Predicated region
  $region14: #{_st_net_exp_forward_impl.1} parent=0 // pred_check
    _
  $region15: #{_st_net_exp_forward_impl.1} parent=0 // pred_check_branch
    %20 = sbr.rel (0) target = $region17
  $region16: #{_st_net_exp_forward_impl.1} parent=0 // pred_region
    _
  $region17: #{_st_net_exp_forward_impl.1} parent=0 // pred_fallthru
    _
  // Predicated region
  $region18: #{_st_net_exp_forward_impl.1} parent=0 // pred_check
    _
  $region19: #{_st_net_exp_forward_impl.1} parent=0 // pred_check_branch
    %22 = sbr.rel (0) target = $region21
  $region20: #{_st_net_exp_forward_impl.1} parent=0 // pred_region
    _
  $region21: #{_st_net_exp_forward_impl.1} parent=0 // pred_fallthru
    _
  // Predicated region
  $region22: #{_st_net_exp_forward_impl.1} parent=0 // pred_check
    _
  $region23: #{_st_net_exp_forward_impl.1} parent=0 // pred_check_branch
    %24 = sbr.rel (0) target = $region25
  $region24: #{_st_net_exp_forward_impl.1} parent=0 // pred_region
    _
  $region25: #{_st_net_exp_forward_impl.1} parent=0 // pred_fallthru
    _
  %v26 = vld [vmem:[%s0] sm:$0xf]
  %v27 = vld [vmem:[%s0 + $0x4] sm:$0xf]
  %v28 = vld [vmem:[%s1] sm:$0xf]
  %v29 = vld [vmem:[%s1 + $0x4] sm:$0xf]
  %v30 = vld [vmem:[%s2] sm:$0x1]
  %v32 = vlaneseq
  %v33 = vshrl.u32 %v32, 7
  %v34 = vsub.s32 0, %v33
  %v35 = vrot.slane %v30, %v34
  %v39 = vunpack.c.l.b16 %v26
  %v40 = vunpack.c.l.b16 %v27
  %v41 = vpack.c.b16 %v40, %v39
  %v44 = vunpack.c.l.b16 %v28
  %v45 = vunpack.c.l.b16 %v29
  %v46 = vpack.c.b16 %v45, %v44
  %vm48 = vcmask 130048
  %v50 = vsel %vm48, %v41, 0
  %52 = vmatprep.subr.bf16.mxu0 0
  %53 = vmatpush1.bf16.msra.mxu0 %v46
  %54 = vmatprep.subr.bf16.mxu0 0
  %55 = vmatpush1.bf16.msra.mxu0 0
  %56 = vmatprep.subr.bf16.mxu0 0
  %57 = vmatpush1.bf16.msra.mxu0 0
  %58 = vmatprep.subr.bf16.mxu0 0
  %59 = vmatpush1.bf16.msra.mxu0 0
  %60 = vmatprep.subr.bf16.mxu0 0
  %61 = vmatpush1.bf16.msra.mxu0 0
  %62 = vmatprep.subr.bf16.mxu0 0
  %63 = vmatpush1.bf16.msra.mxu0 0
  %64 = vmatprep.subr.bf16.mxu0 0
  %65 = vmatpush1.bf16.msra.mxu0 0
  %66 = vmatprep.subr.bf16.mxu0 0
  %67 = vmatpush1.bf16.msra.mxu0 0
  %68 = vmatprep.subr.bf16.mxu0 0
  %69 = vmatpush1.bf16.msra.mxu0 0
  %70 = vmatprep.subr.bf16.mxu0 0
  %71 = vmatpush1.bf16.msra.mxu0 0
  %72 = vmatprep.subr.bf16.mxu0 0
  %73 = vmatpush1.bf16.msra.mxu0 0
  %74 = vmatprep.subr.bf16.mxu0 0
  %75 = vmatpush1.bf16.msra.mxu0 0
  %76 = vmatprep.subr.bf16.mxu0 0
  %77 = vmatpush1.bf16.msra.mxu0 0
  %78 = vmatprep.subr.bf16.mxu0 0
  %79 = vmatpush1.bf16.msra.mxu0 0
  %80 = vmatprep.subr.bf16.mxu0 0
  %81 = vmatpush1.bf16.msra.mxu0 0
  %82 = vmatprep.subr.bf16.mxu0 0
  %83 = vmatpush1.bf16.msra.mxu0 0
  %84 = vmatprep.mubr.bf16.mxu0 0
  %85 = vmatmul.mubr.bf16.gmra.mrb[0].mxu0 %v50
  %v86 = vpop.f32.mrb[0].mxu0
  %v87 = vadd.f32 %v35, %v86
  %v88 = vpop.f32.mrb[0].mxu0
  %v89 = vpop.f32.mrb[0].mxu0
  %v90 = vadd.f32 %v35, %v89
  %v91 = vpop.f32.mrb[0].mxu0
  %92 = vdwg.mxu0
  %v93 = vtanh.pop %v87
  %v94 = vtanh.pop %v90
  %v95 = vpack.c.bf16 %v94, %v93
  %v96 = vld [vmem:[%s3] sm:$0xf]
  %v97 = vld [vmem:[%s3 + $0x4] sm:$0xf]
  %v98 = vld [vmem:[%s3 + $0x8] sm:$0xf]
  %v99 = vld [vmem:[%s3 + $0xc] sm:$0xf]
  %v100 = vld [vmem:[%s4] sm:$0x1]
  %v102 = vlaneseq
  %v103 = vshrl.u32 %v102, 7
  %v104 = vsub.s32 0, %v103
  %v105 = vrot.slane %v100, %v104
  %v111 = vunpack.c.l.b16 %v96
  %v112 = vunpack.c.l.b16 %v97
  %v113 = vunpack.c.l.b16 %v98
  %v114 = vunpack.c.l.b16 %v99
  %v115 = vpack.c.b16 %v112, %v111
  %v116 = vpack.c.b16 %v114, %v113
  %vm119 = vcmask 261120
  %v121 = vsel %vm119, %v95, 0
  %123 = vmatprep.subr.bf16.mxu0 0
  %124 = vmatpush1.bf16.msra.mxu0 %v115
  %125 = vmatprep.subr.bf16.mxu0 0
  %126 = vmatpush1.bf16.msra.mxu0 %v116
  %127 = vmatprep.subr.bf16.mxu0 0
  %128 = vmatpush1.bf16.msra.mxu0 0
  %129 = vmatprep.subr.bf16.mxu0 0
  %130 = vmatpush1.bf16.msra.mxu0 0
  %131 = vmatprep.subr.bf16.mxu0 0
  %132 = vmatpush1.bf16.msra.mxu0 0
  %133 = vmatprep.subr.bf16.mxu0 0
  %134 = vmatpush1.bf16.msra.mxu0 0
  %135 = vmatprep.subr.bf16.mxu0 0
  %136 = vmatpush1.bf16.msra.mxu0 0
  %137 = vmatprep.subr.bf16.mxu0 0
  %138 = vmatpush1.bf16.msra.mxu0 0
  %139 = vmatprep.subr.bf16.mxu0 0
  %140 = vmatpush1.bf16.msra.mxu0 0
  %141 = vmatprep.subr.bf16.mxu0 0
  %142 = vmatpush1.bf16.msra.mxu0 0
  %143 = vmatprep.subr.bf16.mxu0 0
  %144 = vmatpush1.bf16.msra.mxu0 0
  %145 = vmatprep.subr.bf16.mxu0 0
  %146 = vmatpush1.bf16.msra.mxu0 0
  %147 = vmatprep.subr.bf16.mxu0 0
  %148 = vmatpush1.bf16.msra.mxu0 0
  %149 = vmatprep.subr.bf16.mxu0 0
  %150 = vmatpush1.bf16.msra.mxu0 0
  %151 = vmatprep.subr.bf16.mxu0 0
  %152 = vmatpush1.bf16.msra.mxu0 0
  %153 = vmatprep.subr.bf16.mxu0 0
  %154 = vmatpush1.bf16.msra.mxu0 0
  %155 = vmatprep.mubr.bf16.mxu0 0
  %156 = vmatmul.mubr.bf16.gmra.mrb[0].mxu0 %v121
  %v157 = vpop.f32.mrb[0].mxu0
  %v158 = vadd.f32 %v105, %v157
  %v159 = vpop.f32.mrb[0].mxu0
  %v160 = vpop.f32.mrb[0].mxu0
  %v161 = vadd.f32 %v105, %v160
  %v162 = vpop.f32.mrb[0].mxu0
  %163 = vdwg.mxu0
  %v164 = vld [vmem:[#allocation2] sm:$0x1]
  %s165 = vtos %v164
  %v166 = vlaneseq
  %v167 = vand.u32 %v166, 127
  %vm168 = vcmp.lt.s32.totalorder %v167, 16
  %v169 = vtanh.pop %v158
  %v170 = vtanh.pop %v161
  %v171 = vstv %s165
  %v172 = vmul.f32 %v171, %v169
  %v173 = vmul.f32 %v171, %v170
  %v174 = vsel %vm168, %v172, %v158
  %v175 = vsel %vm168, %v173, %v161
  %v176 = vpack.c.bf16 %v175, %v174
  %v178 = vunpack.c.l.b16 %v176
  %v179 = vunpack.c.h.b16 %v176
  %v180 = vpack.c.b16 %v178, %v178
  %v181 = vpack.c.b16 %v179, %v179
  %vm184 = vcmask 257024
  %185 = vst.msk [vmem:[%s6] sm:$0xf] %vm184, %v180
  %186 = vst.msk [vmem:[%s6 + $0x4] sm:$0xf] %vm184, %v181
  // Predicated region
  $region26: #{_st_net_exp_forward_impl.1} parent=0 // pred_check
    _
  $region27: #{_st_net_exp_forward_impl.1} parent=0 // pred_check_branch
    %188 = sbr.rel (0) target = $region29
  $region28: #{_st_net_exp_forward_impl.1} parent=0 // pred_region
    _
  $region29: #{_st_net_exp_forward_impl.1} parent=0 // pred_fallthru
    _
  // Predicated region
  $region30: #{_st_net_exp_forward_impl.1} parent=0 // pred_check
    _
  $region31: #{_st_net_exp_forward_impl.1} parent=0 // pred_check_branch
    %190 = sbr.rel (0) target = $region33
  $region32: #{_st_net_exp_forward_impl.1} parent=0 // pred_region
    _
  $region33: #{_st_net_exp_forward_impl.1} parent=0 // pred_fallthru
    _

// kernel: _st_net_exp_forward_impl.1
$region0: #{_st_net_exp_forward_impl.1}
  #allocation0 [shape = 'u32[]', space=smem, size = 0x4, offset = 0x4, fixed_abs, tag = 'smem constant byte address 0x4 - core index']
  #allocation1 [shape = 'u32[144,128]{1,0:T(1,128)}', space=vmem, size = 0x12000, scoped, tag = 'internal scratch']
  #allocation2 [shape = 'f32[1,1]{1,0:T(1,128)S(1)}', space=vmem, size = 0x200, scoped, tag = 'scoped memory for _st_net_exp_forward_impl.1']
  %s0 = inlined_call_operand.vmem [shape: bf16[16,16], index: 0, kind: input, shape index: {}]
  %s1 = inlined_call_operand.vmem [shape: bf16[16,32], index: 1, kind: input, shape index: {}]
  %s2 = inlined_call_operand.vmem [shape: f32[1,32], index: 2, kind: input, shape index: {}]
  %s3 = inlined_call_operand.vmem [shape: bf16[32,32], index: 3, kind: input, shape index: {}]
  %s4 = inlined_call_operand.vmem [shape: f32[1,32], index: 4, kind: input, shape index: {}]
  %s5 = inlined_call_operand.<no memory space> [shape: f32[1,1], index: 5, kind: input, shape index: {}]
  %s6 = inlined_call_operand.vmem [shape: bf16[16,32], index: 6, kind: output, shape index: {}]
  %s7 = sld [smem:[#allocation0]]
  $region34: #{_st_net_exp_forward_impl.1} parent=0
    _
  %s9 = ssub.s32 1, %s7
  %s10 = scalar_select 0, %s9, %s7
  %v11 = vstv %s5
  %12 = vst [vmem:[#allocation2] sm:$0x1] %v11
  // Predicated region
  $region2: #{_st_net_exp_forward_impl.1} parent=0 // pred_check
    _
  $region3: #{_st_net_exp_forward_impl.1} parent=0 // pred_check_branch
    %14 = sbr.rel (0) target = $region5
  $region4: #{_st_net_exp_forward_impl.1} parent=0 // pred_region
    _
  $region5: #{_st_net_exp_forward_impl.1} parent=0 // pred_fallthru
    _
  // Predicated region
  $region6: #{_st_net_exp_forward_impl.1} parent=0 // pred_check
    _
  $region7: #{_st_net_exp_forward_impl.1} parent=0 // pred_check_branch
    %16 = sbr.rel (0) target = $region9
  $region8: #{_st_net_exp_forward_impl.1} parent=0 // pred_region
    _
  $region9: #{_st_net_exp_forward_impl.1} parent=0 // pred_fallthru
    _
  // Predicated region
  $region10: #{_st_net_exp_forward_impl.1} parent=0 // pred_check
    _
  $region11: #{_st_net_exp_forward_impl.1} parent=0 // pred_check_branch
    %18 = sbr.rel (0) target = $region13
  $region12: #{_st_net_exp_forward_impl.1} parent=0 // pred_region
    _
  $region13: #{_st_net_exp_forward_impl.1} parent=0 // pred_fallthru
    _
  // Predicated region
  $region14: #{_st_net_exp_forward_impl.1} parent=0 // pred_check
    _
  $region15: #{_st_net_exp_forward_impl.1} parent=0 // pred_check_branch
    %20 = sbr.rel (0) target = $region17
  $region16: #{_st_net_exp_forward_impl.1} parent=0 // pred_region
    _
  $region17: #{_st_net_exp_forward_impl.1} parent=0 // pred_fallthru
    _
  // Predicated region
  $region18: #{_st_net_exp_forward_impl.1} parent=0 // pred_check
    _
  $region19: #{_st_net_exp_forward_impl.1} parent=0 // pred_check_branch
    %22 = sbr.rel (0) target = $region21
  $region20: #{_st_net_exp_forward_impl.1} parent=0 // pred_region
    _
  $region21: #{_st_net_exp_forward_impl.1} parent=0 // pred_fallthru
    _
  // Predicated region
  $region22: #{_st_net_exp_forward_impl.1} parent=0 // pred_check
    _
  $region23: #{_st_net_exp_forward_impl.1} parent=0 // pred_check_branch
    %24 = sbr.rel (0) target = $region25
  $region24: #{_st_net_exp_forward_impl.1} parent=0 // pred_region
    _
  $region25: #{_st_net_exp_forward_impl.1} parent=0 // pred_fallthru
    _
  %v26 = vld [vmem:[%s0] sm:$0xf]
  %v27 = vld [vmem:[%s0 + $0x4] sm:$0xf]
  %v28 = vld [vmem:[%s1] sm:$0xf]
  %v29 = vld [vmem:[%s1 + $0x4] sm:$0xf]
  %v30 = vld [vmem:[%s2] sm:$0x1]
  %v32 = vlaneseq
  %v33 = vshrl.u32 %v32, 7
  %v34 = vsub.s32 0, %v33
  %v35 = vrot.slane %v30, %v34
  %v39 = vunpack.c.l.b16 %v26
  %v40 = vunpack.c.l.b16 %v27
  %v41 = vpack.c.b16 %v40, %v39
  %v44 = vunpack.c.l.b16 %v28
  %v45 = vunpack.c.l.b16 %v29
  %v46 = vpack.c.b16 %v45, %v44
  %vm48 = vcmask 130048
  %v50 = vsel %vm48, %v41, 0
  %52 = vmatprep.subr.bf16.mxu0 0
  %53 = vmatpush1.bf16.msra.mxu0 %v46
  %54 = vmatprep.subr.bf16.mxu0 0
  %55 = vmatpush1.bf16.msra.mxu0 0
  %56 = vmatprep.subr.bf16.mxu0 0
  %57 = vmatpush1.bf16.msra.mxu0 0
  %58 = vmatprep.subr.bf16.mxu0 0
  %59 = vmatpush1.bf16.msra.mxu0 0
  %60 = vmatprep.subr.bf16.mxu0 0
  %61 = vmatpush1.bf16.msra.mxu0 0
  %62 = vmatprep.subr.bf16.mxu0 0
  %63 = vmatpush1.bf16.msra.mxu0 0
  %64 = vmatprep.subr.bf16.mxu0 0
  %65 = vmatpush1.bf16.msra.mxu0 0
  %66 = vmatprep.subr.bf16.mxu0 0
  %67 = vmatpush1.bf16.msra.mxu0 0
  %68 = vmatprep.subr.bf16.mxu0 0
  %69 = vmatpush1.bf16.msra.mxu0 0
  %70 = vmatprep.subr.bf16.mxu0 0
  %71 = vmatpush1.bf16.msra.mxu0 0
  %72 = vmatprep.subr.bf16.mxu0 0
  %73 = vmatpush1.bf16.msra.mxu0 0
  %74 = vmatprep.subr.bf16.mxu0 0
  %75 = vmatpush1.bf16.msra.mxu0 0
  %76 = vmatprep.subr.bf16.mxu0 0
  %77 = vmatpush1.bf16.msra.mxu0 0
  %78 = vmatprep.subr.bf16.mxu0 0
  %79 = vmatpush1.bf16.msra.mxu0 0
  %80 = vmatprep.subr.bf16.mxu0 0
  %81 = vmatpush1.bf16.msra.mxu0 0
  %82 = vmatprep.subr.bf16.mxu0 0
  %83 = vmatpush1.bf16.msra.mxu0 0
  %84 = vmatprep.mubr.bf16.mxu0 0
  %85 = vmatmul.mubr.bf16.gmra.mrb[0].mxu0 %v50
  %v86 = vpop.f32.mrb[0].mxu0
  %v87 = vadd.f32 %v35, %v86
  %v88 = vpop.f32.mrb[0].mxu0
  %v89 = vpop.f32.mrb[0].mxu0
  %v90 = vadd.f32 %v35, %v89
  %v91 = vpop.f32.mrb[0].mxu0
  %92 = vdwg.mxu0
  %v93 = vtanh.pop %v87
  %v94 = vtanh.pop %v90
  %v95 = vpack.c.bf16 %v94, %v93
  %v96 = vld [vmem:[%s3] sm:$0xf]
  %v97 = vld [vmem:[%s3 + $0x4] sm:$0xf]
  %v98 = vld [vmem:[%s3 + $0x8] sm:$0xf]
  %v99 = vld [vmem:[%s3 + $0xc] sm:$0xf]
  %v100 = vld [vmem:[%s4] sm:$0x1]
  %v102 = vlaneseq
  %v103 = vshrl.u32 %v102, 7
  %v104 = vsub.s32 0, %v103
  %v105 = vrot.slane %v100, %v104
  %v111 = vunpack.c.l.b16 %v96
  %v112 = vunpack.c.l.b16 %v97
  %v113 = vunpack.c.l.b16 %v98
  %v114 = vunpack.c.l.b16 %v99
  %v115 = vpack.c.b16 %v112, %v111
  %v116 = vpack.c.b16 %v114, %v113
  %vm119 = vcmask 261120
  %v121 = vsel %vm119, %v95, 0
  %123 = vmatprep.subr.bf16.mxu0 0
  %124 = vmatpush1.bf16.msra.mxu0 %v115
  %125 = vmatprep.subr.bf16.mxu0 0
  %126 = vmatpush1.bf16.msra.mxu0 %v116
  %127 = vmatprep.subr.bf16.mxu0 0
  %128 = vmatpush1.bf16.msra.mxu0 0
  %129 = vmatprep.subr.bf16.mxu0 0
  %130 = vmatpush1.bf16.msra.mxu0 0
  %131 = vmatprep.subr.bf16.mxu0 0
  %132 = vmatpush1.bf16.msra.mxu0 0
  %133 = vmatprep.subr.bf16.mxu0 0
  %134 = vmatpush1.bf16.msra.mxu0 0
  %135 = vmatprep.subr.bf16.mxu0 0
  %136 = vmatpush1.bf16.msra.mxu0 0
  %137 = vmatprep.subr.bf16.mxu0 0
  %138 = vmatpush1.bf16.msra.mxu0 0
  %139 = vmatprep.subr.bf16.mxu0 0
  %140 = vmatpush1.bf16.msra.mxu0 0
  %141 = vmatprep.subr.bf16.mxu0 0
  %142 = vmatpush1.bf16.msra.mxu0 0
  %143 = vmatprep.subr.bf16.mxu0 0
  %144 = vmatpush1.bf16.msra.mxu0 0
  %145 = vmatprep.subr.bf16.mxu0 0
  %146 = vmatpush1.bf16.msra.mxu0 0
  %147 = vmatprep.subr.bf16.mxu0 0
  %148 = vmatpush1.bf16.msra.mxu0 0
  %149 = vmatprep.subr.bf16.mxu0 0
  %150 = vmatpush1.bf16.msra.mxu0 0
  %151 = vmatprep.subr.bf16.mxu0 0
  %152 = vmatpush1.bf16.msra.mxu0 0
  %153 = vmatprep.subr.bf16.mxu0 0
  %154 = vmatpush1.bf16.msra.mxu0 0
  %155 = vmatprep.mubr.bf16.mxu0 0
  %156 = vmatmul.mubr.bf16.gmra.mrb[0].mxu0 %v121
  %v157 = vpop.f32.mrb[0].mxu0
  %v158 = vadd.f32 %v105, %v157
  %v159 = vpop.f32.mrb[0].mxu0
  %v160 = vpop.f32.mrb[0].mxu0
  %v161 = vadd.f32 %v105, %v160
  %v162 = vpop.f32.mrb[0].mxu0
  %163 = vdwg.mxu0
  %v164 = vld [vmem:[#allocation2] sm:$0x1]
  %s165 = vtos %v164
  %v166 = vlaneseq
  %v167 = vand.u32 %v166, 127
  %vm168 = vcmp.lt.s32.totalorder %v167, 16
  %v169 = vtanh.pop %v158
  %v170 = vtanh.pop %v161
  %v171 = vstv %s165
  %v172 = vmul.f32 %v171, %v169
  %v173 = vmul.f32 %v171, %v170
  %v174 = vsel %vm168, %v172, %v158
  %v175 = vsel %vm168, %v173, %v161
  %v176 = vpack.c.bf16 %v175, %v174
  %v178 = vunpack.c.l.b16 %v176
  %v179 = vunpack.c.h.b16 %v176
  %v180 = vpack.c.b16 %v178, %v178
  %v181 = vpack.c.b16 %v179, %v179
  %vm184 = vcmask 257024
  %185 = vst.msk [vmem:[%s6] sm:$0xf] %vm184, %v180
  %186 = vst.msk [vmem:[%s6 + $0x4] sm:$0xf] %vm184, %v181
  // Predicated region
  $region26: #{_st_net_exp_forward_impl.1} parent=0 // pred_check
    _
  $region27: #{_st_net_exp_forward_impl.1} parent=0 // pred_check_branch
    %188 = sbr.rel (0) target = $region29
  $region28: #{_st_net_exp_forward_impl.1} parent=0 // pred_region
    _
  $region29: #{_st_net_exp_forward_impl.1} parent=0 // pred_fallthru
    _
  // Predicated region
  $region30: #{_st_net_exp_forward_impl.1} parent=0 // pred_check
    _
  $region31: #{_st_net_exp_forward_impl.1} parent=0 // pred_check_branch
    %190 = sbr.rel (0) target = $region33
  $region32: #{_st_net_exp_forward_impl.1} parent=0 // pred_region
    _
  $region33: #{_st_net_exp_forward_impl.1} parent=0 // pred_fallthru
    _

</llo_original>
